<compile_context>
chip_gen: v6e
topology: v6e:2x2x1
jax: 0.10.0
libtpu: 0.0.40
codegen_flags: <defaults>
</compile_context>

<pallas_src>
import jax
import jax.numpy as jnp
from jax.experimental import pallas as pl
from jax.experimental.pallas import tpu as pltpu


# ----------------------------- config ---------------------------------------
BATCH = 2
SEQ = 8
HIDDEN = 32
INTER = 64
VOCAB = 50
NUM_LABELS = 3
LN_EPS = 1e-12


# ----------------------------- in-kernel helpers -----------------------------
def _layernorm(x, gamma, beta):
    mean = jnp.mean(x, axis=-1, keepdims=True)
    var = jnp.mean((x - mean) ** 2, axis=-1, keepdims=True)
    return (x - mean) * jax.lax.rsqrt(var + LN_EPS) * gamma + beta


def _gelu(x):
    # tanh approximation (EUP-friendly), kept in f32
    c = 0.7978845608028654  # sqrt(2/pi)
    return 0.5 * x * (1.0 + jnp.tanh(c * (x + 0.044715 * x * x * x)))


# ----------------------------- fused kernel ----------------------------------
def fused_kernel(emb_ref, mask_ref,
                 wqkv_ref, wo_ref, w1_ref, w2_ref, wp_ref, wc_ref,
                 bqkv_ref, b1_ref, bc_ref, vec_ref,
                 out_ref):
    """Whole batch in one invocation.

    vec_ref rows (packed [9, H] f32 table of small per-layer vectors):
      0 emb_ln_g  1 emb_ln_b  2 bo  3 ln1_g  4 ln1_b  5 b2  6 ln2_g  7 ln2_b  8 bp
    """
    f32 = jnp.float32
    bf16 = jnp.bfloat16

    def vrow(i):                       # [1, H] row from the packed vector table
        return vec_ref[i:i + 1, :]

    emb = emb_ref[...]                           # [B, S, H] f32
    mask = mask_ref[...].astype(f32)             # [B, S]   (cast fused in-kernel)

    # --- embedding layernorm (fused; only the gathers stay in plain JAX) ---
    x = _layernorm(emb, vrow(0), vrow(1))        # [B, S, H]

    # --- fused QKV projection: one matmul instead of three ---
    qkv = jnp.einsum("bsh,hk->bsk", x.astype(bf16), wqkv_ref[...],
                     preferred_element_type=f32) + bqkv_ref[...]      # [B,S,3H]
    q = qkv[:, :, :HIDDEN]
    k = qkv[:, :, HIDDEN:2 * HIDDEN]
    v = qkv[:, :, 2 * HIDDEN:]

    # --- attention (contraction on last dim: no explicit k transpose) ---
    scale = 1.0 / (HIDDEN ** 0.5)
    scores = jnp.einsum("bqd,bkd->bqk", q.astype(bf16), k.astype(bf16),
                        preferred_element_type=f32) * scale           # [B,S,S]
    scores = scores + (1.0 - mask)[:, None, :] * (-1e9)               # mask keys (f32)
    m = jnp.max(scores, axis=-1, keepdims=True)
    e = jnp.exp(scores - m)
    attn = e * pl.reciprocal(jnp.sum(e, axis=-1, keepdims=True), approx=True)

    ctx = jnp.einsum("bqk,bkd->bqd", attn.astype(bf16), v.astype(bf16),
                     preferred_element_type=f32)                      # [B,S,H]
    attn_out = jnp.einsum("bsh,hk->bsk", ctx.astype(bf16), wo_ref[...],
                          preferred_element_type=f32) + vrow(2)
    h1 = _layernorm(x + attn_out, vrow(3), vrow(4))

    # --- FFN ---
    ffn = jnp.einsum("bsh,hi->bsi", h1.astype(bf16), w1_ref[...],
                     preferred_element_type=f32) + b1_ref[...]
    ffn = _gelu(ffn)
    ffn = jnp.einsum("bsi,ih->bsh", ffn.astype(bf16), w2_ref[...],
                     preferred_element_type=f32) + vrow(5)
    h2 = _layernorm(h1 + ffn, vrow(6), vrow(7))                       # [B,S,H]

    # --- pooler + classifier + softmax (fused head; dropout = identity) ---
    cls = h2[:, 0, :]                                                 # [B, H]
    pooled = jnp.tanh(
        jnp.dot(cls.astype(bf16), wp_ref[...], preferred_element_type=f32)
        + vrow(8))
    logits = jnp.dot(pooled.astype(bf16), wc_ref[...],
                     preferred_element_type=f32) + bc_ref[...]        # [B, L]
    m2 = jnp.max(logits, axis=-1, keepdims=True)
    e2 = jnp.exp(logits - m2)
    # exact divide on the tiny final softmax so rows sum to 1 within f32 rounding
    out_ref[...] = e2 / jnp.sum(e2, axis=-1, keepdims=True)


# ----------------------------- wrapper ----------------------------------------
@jax.jit
def rationale_predictor_forward(input_ids, token_type_ids, attention_mask, params):
    # Plain-JAX glue: only the embedding gathers.
    emb = (params["word_emb"][input_ids]
           + params["type_emb"][token_type_ids]
           + params["pos_emb"][None, :input_ids.shape[1], :]).astype(jnp.float32)

    B, _ = input_ids.shape
    L = NUM_LABELS

    # Fuse q/k/v weights into one [H, 3H] matmul weight; matmul weights in bf16.
    wqkv = jnp.concatenate(
        [params["wq"], params["wk"], params["wv"]], axis=1).astype(jnp.bfloat16)
    bqkv = jnp.concatenate([params["bq"], params["bk"], params["bv"]])[None, :]   # [1,3H]

    # Pack all H-dim small vectors into one [9, H] table (fewer DMA descriptors).
    vec = jnp.stack([params["emb_ln_g"], params["emb_ln_b"],
                     params["bo"], params["ln1_g"], params["ln1_b"],
                     params["b2"], params["ln2_g"], params["ln2_b"],
                     params["bp"]], axis=0).astype(jnp.float32)

    # Single pallas_call, no grid (one step), whole arrays resident in VMEM.
    return pl.pallas_call(
        fused_kernel,
        out_shape=jax.ShapeDtypeStruct((B, L), jnp.float32),
    )(emb, attention_mask.astype(jnp.int32),
      wqkv,
      params["wo"].astype(jnp.bfloat16),
      params["w1"].astype(jnp.bfloat16),
      params["w2"].astype(jnp.bfloat16),
      params["wp"].astype(jnp.bfloat16),
      params["wc"].astype(jnp.bfloat16),
      bqkv, params["b1"][None, :], params["bc"][None, :], vec)


# ----------------------------- param init ------------------------------------
def init_params(key):
    ks = jax.random.split(key, 24)
    n = iter(range(24))
    f = lambda k, shape: (0.02 * jax.random.normal(k, shape)).astype(jnp.float32)
    H, I, L, V, S = HIDDEN, INTER, NUM_LABELS, VOCAB, SEQ
    return {
        "word_emb": f(ks[next(n)], (V, H)),
        "type_emb": f(ks[next(n)], (2, H)),
        "pos_emb": f(ks[next(n)], (S, H)),
        "emb_ln_g": jnp.ones((H,), jnp.float32),
        "emb_ln_b": jnp.zeros((H,), jnp.float32),
        "wq": f(ks[next(n)], (H, H)), "bq": jnp.zeros((H,), jnp.float32),
        "wk": f(ks[next(n)], (H, H)), "bk": jnp.zeros((H,), jnp.float32),
        "wv": f(ks[next(n)], (H, H)), "bv": jnp.zeros((H,), jnp.float32),
        "wo": f(ks[next(n)], (H, H)), "bo": jnp.zeros((H,), jnp.float32),
        "ln1_g": jnp.ones((H,), jnp.float32), "ln1_b": jnp.zeros((H,), jnp.float32),
        "w1": f(ks[next(n)], (H, I)), "b1": jnp.zeros((I,), jnp.float32),
        "w2": f(ks[next(n)], (I, H)), "b2": jnp.zeros((H,), jnp.float32),
        "ln2_g": jnp.ones((H,), jnp.float32), "ln2_b": jnp.zeros((H,), jnp.float32),
        "wp": f(ks[next(n)], (H, H)), "bp": jnp.zeros((H,), jnp.float32),
        "wc": f(ks[next(n)], (H, L)), "bc": jnp.zeros((L,), jnp.float32),
    }


# ----------------------------- main ------------------------------------------
if __name__ == "__main__":
    key = jax.random.PRNGKey(0)
    kp, ki = jax.random.split(key)
    params = init_params(kp)

    input_ids = jax.random.randint(ki, (BATCH, SEQ), 0, VOCAB, dtype=jnp.int32)
    token_type_ids = jnp.zeros((BATCH, SEQ), jnp.int32)
    attention_mask = jnp.ones((BATCH, SEQ), jnp.int32)
    attention_mask = attention_mask.at[1, SEQ - 2:].set(0)   # exercise masking

    probs = rationale_predictor_forward(input_ids, token_type_ids,
                                        attention_mask, params)
    probs = jax.block_until_ready(probs)

    assert probs.shape == (BATCH, NUM_LABELS)
    assert bool(jnp.all(jnp.isfinite(probs)))
    assert bool(jnp.allclose(jnp.sum(probs, axis=-1), 1.0, atol=1e-4))
    print("KERNEL_OK")
</pallas_src>

<mosaic_0001>
module attributes {stable_mosaic.version = 11 : i64} {
  func.func @fused_kernel(%arg0: memref<2x8x32xf32, #tpu.memory_space<vmem>>, %arg1: memref<2x8xi32, #tpu.memory_space<vmem>>, %arg2: memref<32x96xbf16, #tpu.memory_space<vmem>>, %arg3: memref<32x32xbf16, #tpu.memory_space<vmem>>, %arg4: memref<32x64xbf16, #tpu.memory_space<vmem>>, %arg5: memref<64x32xbf16, #tpu.memory_space<vmem>>, %arg6: memref<32x32xbf16, #tpu.memory_space<vmem>>, %arg7: memref<32x3xbf16, #tpu.memory_space<vmem>>, %arg8: memref<1x96xf32, #tpu.memory_space<vmem>>, %arg9: memref<1x64xf32, #tpu.memory_space<vmem>>, %arg10: memref<1x3xf32, #tpu.memory_space<vmem>>, %arg11: memref<9x32xf32, #tpu.memory_space<vmem>>, %arg12: memref<2x3xf32, #tpu.memory_space<vmem>>) attributes {dimension_semantics = [], scalar_prefetch = 0 : i64, scratch_operands = 0 : i64, tpu.core_type = #tpu.core_type<tc>} {
    %c0 = arith.constant 0 : index
    %c0_0 = arith.constant 0 : index
    %c0_1 = arith.constant 0 : index
    %0 = vector.load %arg0[%c0, %c0_0, %c0_1] : memref<2x8x32xf32, #tpu.memory_space<vmem>>, vector<2x8x32xf32>
    %c0_2 = arith.constant 0 : index
    %c0_3 = arith.constant 0 : index
    %1 = vector.load %arg1[%c0_2, %c0_3] : memref<2x8xi32, #tpu.memory_space<vmem>>, vector<2x8xi32>
    %2 = arith.sitofp %1 : vector<2x8xi32> to vector<2x8xf32>
    %c0_4 = arith.constant 0 : index
    %c0_5 = arith.constant 0 : index
    %3 = vector.load %arg11[%c0_4, %c0_5] : memref<9x32xf32, #tpu.memory_space<vmem>>, vector<1x32xf32>
    %c1 = arith.constant 1 : index
    %c0_6 = arith.constant 0 : index
    %4 = vector.load %arg11[%c1, %c0_6] : memref<9x32xf32, #tpu.memory_space<vmem>>, vector<1x32xf32>
    %cst = arith.constant dense<0.000000e+00> : vector<2x8xf32>
    %5 = vector.multi_reduction <add>, %0, %cst [2] : vector<2x8x32xf32> to vector<2x8xf32>
    %6 = vector.shape_cast %5 : vector<2x8xf32> to vector<2x8x1xf32>
    %cst_7 = arith.constant 3.200000e+01 : f32
    %7 = vector.broadcast %cst_7 : f32 to vector<2x8x1xf32>
    %8 = arith.divf %6, %7 : vector<2x8x1xf32>
    %9 = vector.broadcast %8 : vector<2x8x1xf32> to vector<2x8x32xf32>
    %10 = arith.subf %0, %9 : vector<2x8x32xf32>
    %11 = arith.mulf %10, %10 : vector<2x8x32xf32>
    %cst_8 = arith.constant dense<0.000000e+00> : vector<2x8xf32>
    %12 = vector.multi_reduction <add>, %11, %cst_8 [2] : vector<2x8x32xf32> to vector<2x8xf32>
    %13 = vector.shape_cast %12 : vector<2x8xf32> to vector<2x8x1xf32>
    %cst_9 = arith.constant 3.200000e+01 : f32
    %14 = vector.broadcast %cst_9 : f32 to vector<2x8x1xf32>
    %15 = arith.divf %13, %14 : vector<2x8x1xf32>
    %16 = vector.broadcast %8 : vector<2x8x1xf32> to vector<2x8x32xf32>
    %17 = arith.subf %0, %16 : vector<2x8x32xf32>
    %cst_10 = arith.constant 9.99999996E-13 : f32
    %18 = vector.broadcast %cst_10 : f32 to vector<2x8x1xf32>
    %19 = arith.addf %15, %18 : vector<2x8x1xf32>
    %20 = math.rsqrt %19 : vector<2x8x1xf32>
    %21 = vector.broadcast %20 : vector<2x8x1xf32> to vector<2x8x32xf32>
    %22 = arith.mulf %17, %21 : vector<2x8x32xf32>
    %23 = vector.shape_cast %3 : vector<1x32xf32> to vector<1x1x32xf32>
    %24 = vector.broadcast %23 : vector<1x1x32xf32> to vector<2x8x32xf32>
    %25 = arith.mulf %22, %24 : vector<2x8x32xf32>
    %26 = vector.shape_cast %4 : vector<1x32xf32> to vector<1x1x32xf32>
    %27 = vector.broadcast %26 : vector<1x1x32xf32> to vector<2x8x32xf32>
    %28 = arith.addf %25, %27 : vector<2x8x32xf32>
    %29 = arith.truncf %28 : vector<2x8x32xf32> to vector<2x8x32xbf16>
    %c0_11 = arith.constant 0 : index
    %c0_12 = arith.constant 0 : index
    %30 = vector.load %arg2[%c0_11, %c0_12] : memref<32x96xbf16, #tpu.memory_space<vmem>>, vector<32x96xbf16>
    "tpu.trace_start"() <{level = 10 : i32, message = "bsh,hk->bsk"}> : () -> ()
    %cst_13 = arith.constant dense<0.000000e+00> : vector<2x8x96xf32>
    %31 = tpu.matmul %29, %30, %cst_13 {dimension_numbers = #tpu.dot_dimension_numbers<[2], [0], [0, 1], [1], [0, 0, 0, 1, 1, 1], [], []>} : vector<2x8x32xbf16>, vector<32x96xbf16>, vector<2x8x96xf32> -> vector<2x8x96xf32>
    "tpu.trace_stop"() : () -> ()
    %c0_14 = arith.constant 0 : index
    %c0_15 = arith.constant 0 : index
    %32 = vector.load %arg8[%c0_14, %c0_15] : memref<1x96xf32, #tpu.memory_space<vmem>>, vector<1x96xf32>
    %33 = vector.shape_cast %32 : vector<1x96xf32> to vector<1x1x96xf32>
    %34 = vector.broadcast %33 : vector<1x1x96xf32> to vector<2x8x96xf32>
    %35 = arith.addf %31, %34 : vector<2x8x96xf32>
    %36 = vector.extract_strided_slice %35 {offsets = [0, 0, 0], sizes = [2, 8, 32], strides = [1, 1, 1]} : vector<2x8x96xf32> to vector<2x8x32xf32>
    %37 = vector.extract_strided_slice %35 {offsets = [0, 0, 32], sizes = [2, 8, 32], strides = [1, 1, 1]} : vector<2x8x96xf32> to vector<2x8x32xf32>
    %38 = vector.extract_strided_slice %35 {offsets = [0, 0, 64], sizes = [2, 8, 32], strides = [1, 1, 1]} : vector<2x8x96xf32> to vector<2x8x32xf32>
    %39 = arith.truncf %36 : vector<2x8x32xf32> to vector<2x8x32xbf16>
    %40 = arith.truncf %37 : vector<2x8x32xf32> to vector<2x8x32xbf16>
    "tpu.trace_start"() <{level = 10 : i32, message = "bqd,bkd->bqk"}> : () -> ()
    %cst_16 = arith.constant dense<0.000000e+00> : vector<2x8x8xf32>
    %41 = tpu.matmul %39, %40, %cst_16 {dimension_numbers = #tpu.dot_dimension_numbers<[2], [2], [1], [1], [0, 0, 0, 1, 1, 1], [0], [0]>} : vector<2x8x32xbf16>, vector<2x8x32xbf16>, vector<2x8x8xf32> -> vector<2x8x8xf32>
    "tpu.trace_stop"() : () -> ()
    %cst_17 = arith.constant 0.176776692 : f32
    %42 = vector.broadcast %cst_17 : f32 to vector<2x8x8xf32>
    %43 = arith.mulf %41, %42 : vector<2x8x8xf32>
    %cst_18 = arith.constant 1.000000e+00 : f32
    %44 = vector.broadcast %cst_18 : f32 to vector<2x8xf32>
    %45 = arith.subf %44, %2 : vector<2x8xf32>
    %46 = vector.shape_cast %45 : vector<2x8xf32> to vector<2x1x8xf32>
    %cst_19 = arith.constant -1.000000e+09 : f32
    %47 = vector.broadcast %cst_19 : f32 to vector<2x1x8xf32>
    %48 = arith.mulf %46, %47 : vector<2x1x8xf32>
    %49 = vector.broadcast %48 : vector<2x1x8xf32> to vector<2x8x8xf32>
    %50 = arith.addf %43, %49 : vector<2x8x8xf32>
    %cst_20 = arith.constant dense<0xFF800000> : vector<2x8xf32>
    %51 = vector.multi_reduction <maximumf>, %50, %cst_20 [2] : vector<2x8x8xf32> to vector<2x8xf32>
    %52 = vector.shape_cast %51 : vector<2x8xf32> to vector<2x8x1xf32>
    %53 = vector.broadcast %52 : vector<2x8x1xf32> to vector<2x8x8xf32>
    %54 = arith.subf %50, %53 : vector<2x8x8xf32>
    %55 = math.exp %54 : vector<2x8x8xf32>
    %cst_21 = arith.constant dense<0.000000e+00> : vector<2x8xf32>
    %56 = vector.multi_reduction <add>, %55, %cst_21 [2] : vector<2x8x8xf32> to vector<2x8xf32>
    %57 = vector.shape_cast %56 : vector<2x8xf32> to vector<2x8x1xf32>
    %58 = tpu.reciprocal %57 {approx = true} : vector<2x8x1xf32> -> vector<2x8x1xf32>
    %59 = vector.broadcast %58 : vector<2x8x1xf32> to vector<2x8x8xf32>
    %60 = arith.mulf %55, %59 : vector<2x8x8xf32>
    %61 = arith.truncf %60 : vector<2x8x8xf32> to vector<2x8x8xbf16>
    %62 = arith.truncf %38 : vector<2x8x32xf32> to vector<2x8x32xbf16>
    "tpu.trace_start"() <{level = 10 : i32, message = "bqk,bkd->bqd"}> : () -> ()
    %cst_22 = arith.constant dense<0.000000e+00> : vector<2x8x32xf32>
    %63 = tpu.matmul %61, %62, %cst_22 {dimension_numbers = #tpu.dot_dimension_numbers<[2], [1], [1], [2], [0, 0, 0, 1, 1, 2], [0], [0]>} : vector<2x8x8xbf16>, vector<2x8x32xbf16>, vector<2x8x32xf32> -> vector<2x8x32xf32>
    "tpu.trace_stop"() : () -> ()
    %64 = arith.truncf %63 : vector<2x8x32xf32> to vector<2x8x32xbf16>
    %c0_23 = arith.constant 0 : index
    %c0_24 = arith.constant 0 : index
    %65 = vector.load %arg3[%c0_23, %c0_24] : memref<32x32xbf16, #tpu.memory_space<vmem>>, vector<32x32xbf16>
    "tpu.trace_start"() <{level = 10 : i32, message = "bsh,hk->bsk"}> : () -> ()
    %cst_25 = arith.constant dense<0.000000e+00> : vector<2x8x32xf32>
    %66 = tpu.matmul %64, %65, %cst_25 {dimension_numbers = #tpu.dot_dimension_numbers<[2], [0], [0, 1], [1], [0, 0, 0, 1, 1, 1], [], []>} : vector<2x8x32xbf16>, vector<32x32xbf16>, vector<2x8x32xf32> -> vector<2x8x32xf32>
    "tpu.trace_stop"() : () -> ()
    %c2 = arith.constant 2 : index
    %c0_26 = arith.constant 0 : index
    %67 = vector.load %arg11[%c2, %c0_26] : memref<9x32xf32, #tpu.memory_space<vmem>>, vector<1x32xf32>
    %68 = vector.shape_cast %67 : vector<1x32xf32> to vector<1x1x32xf32>
    %69 = vector.broadcast %68 : vector<1x1x32xf32> to vector<2x8x32xf32>
    %70 = arith.addf %66, %69 : vector<2x8x32xf32>
    %71 = arith.addf %28, %70 : vector<2x8x32xf32>
    %c3 = arith.constant 3 : index
    %c0_27 = arith.constant 0 : index
    %72 = vector.load %arg11[%c3, %c0_27] : memref<9x32xf32, #tpu.memory_space<vmem>>, vector<1x32xf32>
    %c4 = arith.constant 4 : index
    %c0_28 = arith.constant 0 : index
    %73 = vector.load %arg11[%c4, %c0_28] : memref<9x32xf32, #tpu.memory_space<vmem>>, vector<1x32xf32>
    %cst_29 = arith.constant dense<0.000000e+00> : vector<2x8xf32>
    %74 = vector.multi_reduction <add>, %71, %cst_29 [2] : vector<2x8x32xf32> to vector<2x8xf32>
    %75 = vector.shape_cast %74 : vector<2x8xf32> to vector<2x8x1xf32>
    %cst_30 = arith.constant 3.200000e+01 : f32
    %76 = vector.broadcast %cst_30 : f32 to vector<2x8x1xf32>
    %77 = arith.divf %75, %76 : vector<2x8x1xf32>
    %78 = vector.broadcast %77 : vector<2x8x1xf32> to vector<2x8x32xf32>
    %79 = arith.subf %71, %78 : vector<2x8x32xf32>
    %80 = arith.mulf %79, %79 : vector<2x8x32xf32>
    %cst_31 = arith.constant dense<0.000000e+00> : vector<2x8xf32>
    %81 = vector.multi_reduction <add>, %80, %cst_31 [2] : vector<2x8x32xf32> to vector<2x8xf32>
    %82 = vector.shape_cast %81 : vector<2x8xf32> to vector<2x8x1xf32>
    %cst_32 = arith.constant 3.200000e+01 : f32
    %83 = vector.broadcast %cst_32 : f32 to vector<2x8x1xf32>
    %84 = arith.divf %82, %83 : vector<2x8x1xf32>
    %85 = vector.broadcast %77 : vector<2x8x1xf32> to vector<2x8x32xf32>
    %86 = arith.subf %71, %85 : vector<2x8x32xf32>
    %cst_33 = arith.constant 9.99999996E-13 : f32
    %87 = vector.broadcast %cst_33 : f32 to vector<2x8x1xf32>
    %88 = arith.addf %84, %87 : vector<2x8x1xf32>
    %89 = math.rsqrt %88 : vector<2x8x1xf32>
    %90 = vector.broadcast %89 : vector<2x8x1xf32> to vector<2x8x32xf32>
    %91 = arith.mulf %86, %90 : vector<2x8x32xf32>
    %92 = vector.shape_cast %72 : vector<1x32xf32> to vector<1x1x32xf32>
    %93 = vector.broadcast %92 : vector<1x1x32xf32> to vector<2x8x32xf32>
    %94 = arith.mulf %91, %93 : vector<2x8x32xf32>
    %95 = vector.shape_cast %73 : vector<1x32xf32> to vector<1x1x32xf32>
    %96 = vector.broadcast %95 : vector<1x1x32xf32> to vector<2x8x32xf32>
    %97 = arith.addf %94, %96 : vector<2x8x32xf32>
    %98 = arith.truncf %97 : vector<2x8x32xf32> to vector<2x8x32xbf16>
    %c0_34 = arith.constant 0 : index
    %c0_35 = arith.constant 0 : index
    %99 = vector.load %arg4[%c0_34, %c0_35] : memref<32x64xbf16, #tpu.memory_space<vmem>>, vector<32x64xbf16>
    "tpu.trace_start"() <{level = 10 : i32, message = "bsh,hi->bsi"}> : () -> ()
    %cst_36 = arith.constant dense<0.000000e+00> : vector<2x8x64xf32>
    %100 = tpu.matmul %98, %99, %cst_36 {dimension_numbers = #tpu.dot_dimension_numbers<[2], [0], [0, 1], [1], [0, 0, 0, 1, 1, 1], [], []>} : vector<2x8x32xbf16>, vector<32x64xbf16>, vector<2x8x64xf32> -> vector<2x8x64xf32>
    "tpu.trace_stop"() : () -> ()
    %c0_37 = arith.constant 0 : index
    %c0_38 = arith.constant 0 : index
    %101 = vector.load %arg9[%c0_37, %c0_38] : memref<1x64xf32, #tpu.memory_space<vmem>>, vector<1x64xf32>
    %102 = vector.shape_cast %101 : vector<1x64xf32> to vector<1x1x64xf32>
    %103 = vector.broadcast %102 : vector<1x1x64xf32> to vector<2x8x64xf32>
    %104 = arith.addf %100, %103 : vector<2x8x64xf32>
    %cst_39 = arith.constant 5.000000e-01 : f32
    %105 = vector.broadcast %cst_39 : f32 to vector<2x8x64xf32>
    %106 = arith.mulf %105, %104 : vector<2x8x64xf32>
    %cst_40 = arith.constant 4.471500e-02 : f32
    %107 = vector.broadcast %cst_40 : f32 to vector<2x8x64xf32>
    %108 = arith.mulf %107, %104 : vector<2x8x64xf32>
    %109 = arith.mulf %108, %104 : vector<2x8x64xf32>
    %110 = arith.mulf %109, %104 : vector<2x8x64xf32>
    %111 = arith.addf %104, %110 : vector<2x8x64xf32>
    %cst_41 = arith.constant 0.797884583 : f32
    %112 = vector.broadcast %cst_41 : f32 to vector<2x8x64xf32>
    %113 = arith.mulf %112, %111 : vector<2x8x64xf32>
    %114 = math.tanh %113 : vector<2x8x64xf32>
    %cst_42 = arith.constant 1.000000e+00 : f32
    %115 = vector.broadcast %cst_42 : f32 to vector<2x8x64xf32>
    %116 = arith.addf %115, %114 : vector<2x8x64xf32>
    %117 = arith.mulf %106, %116 : vector<2x8x64xf32>
    %118 = arith.truncf %117 : vector<2x8x64xf32> to vector<2x8x64xbf16>
    %c0_43 = arith.constant 0 : index
    %c0_44 = arith.constant 0 : index
    %119 = vector.load %arg5[%c0_43, %c0_44] : memref<64x32xbf16, #tpu.memory_space<vmem>>, vector<64x32xbf16>
    "tpu.trace_start"() <{level = 10 : i32, message = "bsi,ih->bsh"}> : () -> ()
    %cst_45 = arith.constant dense<0.000000e+00> : vector<2x8x32xf32>
    %120 = tpu.matmul %118, %119, %cst_45 {dimension_numbers = #tpu.dot_dimension_numbers<[2], [0], [0, 1], [1], [0, 0, 0, 1, 1, 1], [], []>} : vector<2x8x64xbf16>, vector<64x32xbf16>, vector<2x8x32xf32> -> vector<2x8x32xf32>
    "tpu.trace_stop"() : () -> ()
    %c5 = arith.constant 5 : index
    %c0_46 = arith.constant 0 : index
    %121 = vector.load %arg11[%c5, %c0_46] : memref<9x32xf32, #tpu.memory_space<vmem>>, vector<1x32xf32>
    %122 = vector.shape_cast %121 : vector<1x32xf32> to vector<1x1x32xf32>
    %123 = vector.broadcast %122 : vector<1x1x32xf32> to vector<2x8x32xf32>
    %124 = arith.addf %120, %123 : vector<2x8x32xf32>
    %125 = arith.addf %97, %124 : vector<2x8x32xf32>
    %c6 = arith.constant 6 : index
    %c0_47 = arith.constant 0 : index
    %126 = vector.load %arg11[%c6, %c0_47] : memref<9x32xf32, #tpu.memory_space<vmem>>, vector<1x32xf32>
    %c7 = arith.constant 7 : index
    %c0_48 = arith.constant 0 : index
    %127 = vector.load %arg11[%c7, %c0_48] : memref<9x32xf32, #tpu.memory_space<vmem>>, vector<1x32xf32>
    %cst_49 = arith.constant dense<0.000000e+00> : vector<2x8xf32>
    %128 = vector.multi_reduction <add>, %125, %cst_49 [2] : vector<2x8x32xf32> to vector<2x8xf32>
    %129 = vector.shape_cast %128 : vector<2x8xf32> to vector<2x8x1xf32>
    %cst_50 = arith.constant 3.200000e+01 : f32
    %130 = vector.broadcast %cst_50 : f32 to vector<2x8x1xf32>
    %131 = arith.divf %129, %130 : vector<2x8x1xf32>
    %132 = vector.broadcast %131 : vector<2x8x1xf32> to vector<2x8x32xf32>
    %133 = arith.subf %125, %132 : vector<2x8x32xf32>
    %134 = arith.mulf %133, %133 : vector<2x8x32xf32>
    %cst_51 = arith.constant dense<0.000000e+00> : vector<2x8xf32>
    %135 = vector.multi_reduction <add>, %134, %cst_51 [2] : vector<2x8x32xf32> to vector<2x8xf32>
    %136 = vector.shape_cast %135 : vector<2x8xf32> to vector<2x8x1xf32>
    %cst_52 = arith.constant 3.200000e+01 : f32
    %137 = vector.broadcast %cst_52 : f32 to vector<2x8x1xf32>
    %138 = arith.divf %136, %137 : vector<2x8x1xf32>
    %139 = vector.broadcast %131 : vector<2x8x1xf32> to vector<2x8x32xf32>
    %140 = arith.subf %125, %139 : vector<2x8x32xf32>
    %cst_53 = arith.constant 9.99999996E-13 : f32
    %141 = vector.broadcast %cst_53 : f32 to vector<2x8x1xf32>
    %142 = arith.addf %138, %141 : vector<2x8x1xf32>
    %143 = math.rsqrt %142 : vector<2x8x1xf32>
    %144 = vector.broadcast %143 : vector<2x8x1xf32> to vector<2x8x32xf32>
    %145 = arith.mulf %140, %144 : vector<2x8x32xf32>
    %146 = vector.shape_cast %126 : vector<1x32xf32> to vector<1x1x32xf32>
    %147 = vector.broadcast %146 : vector<1x1x32xf32> to vector<2x8x32xf32>
    %148 = arith.mulf %145, %147 : vector<2x8x32xf32>
    %149 = vector.shape_cast %127 : vector<1x32xf32> to vector<1x1x32xf32>
    %150 = vector.broadcast %149 : vector<1x1x32xf32> to vector<2x8x32xf32>
    %151 = arith.addf %148, %150 : vector<2x8x32xf32>
    %152 = vector.extract_strided_slice %151 {offsets = [0, 0, 0], sizes = [2, 1, 32], strides = [1, 1, 1]} : vector<2x8x32xf32> to vector<2x1x32xf32>
    %153 = vector.shape_cast %152 : vector<2x1x32xf32> to vector<2x32xf32>
    %154 = arith.truncf %153 : vector<2x32xf32> to vector<2x32xbf16>
    %c0_54 = arith.constant 0 : index
    %c0_55 = arith.constant 0 : index
    %155 = vector.load %arg6[%c0_54, %c0_55] : memref<32x32xbf16, #tpu.memory_space<vmem>>, vector<32x32xbf16>
    %cst_56 = arith.constant dense<0.000000e+00> : vector<2x32xf32>
    %156 = tpu.matmul %154, %155, %cst_56 {dimension_numbers = #tpu.dot_dimension_numbers<[1], [0], [0], [1], [0, 0, 1, 1], [], []>} : vector<2x32xbf16>, vector<32x32xbf16>, vector<2x32xf32> -> vector<2x32xf32>
    %c8 = arith.constant 8 : index
    %c0_57 = arith.constant 0 : index
    %157 = vector.load %arg11[%c8, %c0_57] : memref<9x32xf32, #tpu.memory_space<vmem>>, vector<1x32xf32>
    %158 = vector.broadcast %157 : vector<1x32xf32> to vector<2x32xf32>
    %159 = arith.addf %156, %158 : vector<2x32xf32>
    %160 = math.tanh %159 : vector<2x32xf32>
    %161 = arith.truncf %160 : vector<2x32xf32> to vector<2x32xbf16>
    %c0_58 = arith.constant 0 : index
    %c0_59 = arith.constant 0 : index
    %162 = vector.load %arg7[%c0_58, %c0_59] : memref<32x3xbf16, #tpu.memory_space<vmem>>, vector<32x3xbf16>
    %cst_60 = arith.constant dense<0.000000e+00> : vector<2x3xf32>
    %163 = tpu.matmul %161, %162, %cst_60 {dimension_numbers = #tpu.dot_dimension_numbers<[1], [0], [0], [1], [0, 0, 1, 1], [], []>} : vector<2x32xbf16>, vector<32x3xbf16>, vector<2x3xf32> -> vector<2x3xf32>
    %c0_61 = arith.constant 0 : index
    %c0_62 = arith.constant 0 : index
    %164 = vector.load %arg10[%c0_61, %c0_62] : memref<1x3xf32, #tpu.memory_space<vmem>>, vector<1x3xf32>
    %165 = vector.broadcast %164 : vector<1x3xf32> to vector<2x3xf32>
    %166 = arith.addf %163, %165 : vector<2x3xf32>
    %cst_63 = arith.constant dense<0xFF800000> : vector<2xf32>
    %167 = vector.multi_reduction <maximumf>, %166, %cst_63 [1] : vector<2x3xf32> to vector<2xf32>
    %168 = vector.shape_cast %167 : vector<2xf32> to vector<2x1xf32>
    %169 = vector.broadcast %168 : vector<2x1xf32> to vector<2x3xf32>
    %170 = arith.subf %166, %169 : vector<2x3xf32>
    %171 = math.exp %170 : vector<2x3xf32>
    %cst_64 = arith.constant dense<0.000000e+00> : vector<2xf32>
    %172 = vector.multi_reduction <add>, %171, %cst_64 [1] : vector<2x3xf32> to vector<2xf32>
    %173 = vector.shape_cast %172 : vector<2xf32> to vector<2x1xf32>
    %174 = vector.broadcast %173 : vector<2x1xf32> to vector<2x3xf32>
    %175 = arith.divf %171, %174 : vector<2x3xf32>
    %c0_65 = arith.constant 0 : index
    %c0_66 = arith.constant 0 : index
    %176 = vector.load %arg12[%c0_65, %c0_66] : memref<2x3xf32, #tpu.memory_space<vmem>>, vector<2x3xf32>
    tpu.vector_store %arg12[%c0_65, %c0_66], %175 {strides = array<i32>} : memref<2x3xf32, #tpu.memory_space<vmem>>, vector<2x3xf32>,
    return
  }
}

</mosaic_0001>

<llo_original>
// kernel: rationale_predictor_forward.1
$region0: #{rationale_predictor_forward.1}
  #allocation0 [shape = 'u32[]', space=smem, size = 0x4, offset = 0x4, fixed_abs, tag = 'smem constant byte address 0x4 - core index']
  #allocation1 [shape = 'u32[144,128]{1,0:T(1,128)}', space=vmem, size = 0x12000, scoped, tag = 'internal scratch']
  %s0 = inlined_call_operand.vmem [shape: f32[2,8,32], index: 0, kind: input, shape index: {}]
  %s1 = inlined_call_operand.vmem [shape: s32[2,8], index: 1, kind: input, shape index: {}]
  %s2 = inlined_call_operand.vmem [shape: bf16[32,96], index: 2, kind: input, shape index: {}]
  %s3 = inlined_call_operand.vmem [shape: bf16[32,32], index: 3, kind: input, shape index: {}]
  %s4 = inlined_call_operand.vmem [shape: bf16[32,64], index: 4, kind: input, shape index: {}]
  %s5 = inlined_call_operand.vmem [shape: bf16[64,32], index: 5, kind: input, shape index: {}]
  %s6 = inlined_call_operand.vmem [shape: bf16[32,32], index: 6, kind: input, shape index: {}]
  %s7 = inlined_call_operand.vmem [shape: bf16[32,3], index: 7, kind: input, shape index: {}]
  %s8 = inlined_call_operand.vmem [shape: f32[1,96], index: 8, kind: input, shape index: {}]
  %s9 = inlined_call_operand.vmem [shape: f32[1,64], index: 9, kind: input, shape index: {}]
  %s10 = inlined_call_operand.vmem [shape: f32[1,3], index: 10, kind: input, shape index: {}]
  %s11 = inlined_call_operand.vmem [shape: f32[9,32], index: 11, kind: input, shape index: {}]
  %s12 = inlined_call_operand.hbm [shape: f32[2,3], index: 12, kind: output, shape index: {}]
  %s13 = sld [smem:[#allocation0]]
  $region58: #{rationale_predictor_forward.1} parent=0
    _
  %s15 = ssub.s32 1, %s13
  %s16 = scalar_select 0, %s15, %s13
  $region1: #{rationale_predictor_forward.1} parent=0
    #allocation2 [shape = 'u8[1024]{0}', space=vmem, size = 0x400, scoped, tag = 'output window, operand 0, single buffered']
    #allocation3 [shape = 's32[1]{0}', space=sflag, size = 0x4, scoped, tag = 'scoped memory for rationale_predictor_forward.1']
    %17 = vsyncpa [#allocation3], 0
    // Predicated region
    $region2: #{rationale_predictor_forward.1} parent=1 // pred_check
      _
    $region3: #{rationale_predictor_forward.1} parent=1 // pred_check_branch
      %19 = sbr.rel (0) target = $region5
    $region4: #{rationale_predictor_forward.1} parent=1 // pred_region
      _
    $region5: #{rationale_predictor_forward.1} parent=1 // pred_fallthru
      _
    // Predicated region
    $region6: #{rationale_predictor_forward.1} parent=1 // pred_check
      _
    $region7: #{rationale_predictor_forward.1} parent=1 // pred_check_branch
      %21 = sbr.rel (0) target = $region9
    $region8: #{rationale_predictor_forward.1} parent=1 // pred_region
      _
    $region9: #{rationale_predictor_forward.1} parent=1 // pred_fallthru
      _
    // Predicated region
    $region10: #{rationale_predictor_forward.1} parent=1 // pred_check
      _
    $region11: #{rationale_predictor_forward.1} parent=1 // pred_check_branch
      %23 = sbr.rel (0) target = $region13
    $region12: #{rationale_predictor_forward.1} parent=1 // pred_region
      _
    $region13: #{rationale_predictor_forward.1} parent=1 // pred_fallthru
      _
    // Predicated region
    $region14: #{rationale_predictor_forward.1} parent=1 // pred_check
      _
    $region15: #{rationale_predictor_forward.1} parent=1 // pred_check_branch
      %25 = sbr.rel (0) target = $region17
    $region16: #{rationale_predictor_forward.1} parent=1 // pred_region
      _
    $region17: #{rationale_predictor_forward.1} parent=1 // pred_fallthru
      _
    // Predicated region
    $region18: #{rationale_predictor_forward.1} parent=1 // pred_check
      _
    $region19: #{rationale_predictor_forward.1} parent=1 // pred_check_branch
      %27 = sbr.rel (0) target = $region21
    $region20: #{rationale_predictor_forward.1} parent=1 // pred_region
      _
    $region21: #{rationale_predictor_forward.1} parent=1 // pred_fallthru
      _
    // Predicated region
    $region22: #{rationale_predictor_forward.1} parent=1 // pred_check
      _
    $region23: #{rationale_predictor_forward.1} parent=1 // pred_check_branch
      %29 = sbr.rel (0) target = $region25
    $region24: #{rationale_predictor_forward.1} parent=1 // pred_region
      _
    $region25: #{rationale_predictor_forward.1} parent=1 // pred_fallthru
      _
    // Predicated region
    $region26: #{rationale_predictor_forward.1} parent=1 // pred_check
      _
    $region27: #{rationale_predictor_forward.1} parent=1 // pred_check_branch
      %31 = sbr.rel (0) target = $region29
    $region28: #{rationale_predictor_forward.1} parent=1 // pred_region
      _
    $region29: #{rationale_predictor_forward.1} parent=1 // pred_fallthru
      _
    // Predicated region
    $region30: #{rationale_predictor_forward.1} parent=1 // pred_check
      _
    $region31: #{rationale_predictor_forward.1} parent=1 // pred_check_branch
      %33 = sbr.rel (0) target = $region33
    $region32: #{rationale_predictor_forward.1} parent=1 // pred_region
      _
    $region33: #{rationale_predictor_forward.1} parent=1 // pred_fallthru
      _
    // Predicated region
    $region34: #{rationale_predictor_forward.1} parent=1 // pred_check
      _
    $region35: #{rationale_predictor_forward.1} parent=1 // pred_check_branch
      %35 = sbr.rel (0) target = $region37
    $region36: #{rationale_predictor_forward.1} parent=1 // pred_region
      _
    $region37: #{rationale_predictor_forward.1} parent=1 // pred_fallthru
      _
    // Predicated region
    $region38: #{rationale_predictor_forward.1} parent=1 // pred_check
      _
    $region39: #{rationale_predictor_forward.1} parent=1 // pred_check_branch
      %37 = sbr.rel (0) target = $region41
    $region40: #{rationale_predictor_forward.1} parent=1 // pred_region
      _
    $region41: #{rationale_predictor_forward.1} parent=1 // pred_fallthru
      _
    // Predicated region
    $region42: #{rationale_predictor_forward.1} parent=1 // pred_check
      _
    $region43: #{rationale_predictor_forward.1} parent=1 // pred_check_branch
      %39 = sbr.rel (0) target = $region45
    $region44: #{rationale_predictor_forward.1} parent=1 // pred_region
      _
    $region45: #{rationale_predictor_forward.1} parent=1 // pred_fallthru
      _
    // Predicated region
    $region46: #{rationale_predictor_forward.1} parent=1 // pred_check
      _
    $region47: #{rationale_predictor_forward.1} parent=1 // pred_check_branch
      %41 = sbr.rel (0) target = $region49
    $region48: #{rationale_predictor_forward.1} parent=1 // pred_region
      _
    $region49: #{rationale_predictor_forward.1} parent=1 // pred_fallthru
      _
    %v43 = vld [vmem:[%s0] sm:$0xff]
    %v44 = vld [vmem:[%s0 + $0x8] sm:$0xff]
    %v45 = vld [vmem:[%s1] sm:$0x3]
    %v46 = vcvt.s32.f32 %v45
    %v47 = vld [vmem:[%s11] sm:$0x1]
    %v48 = vld [vmem:[%s11 + $0x1] sm:$0x1]
    %vm49 = vcmask 261120
    %v50 = vsel %vm49, %v43, 0.0
    %51 = vadd.xlane.f32.xlu0 %v50
    %v52 = vpop.xlane.xlu0 %51
    %v53 = vsel %vm49, %v44, 0.0
    %54 = vadd.xlane.f32.xlu0 %v53
    %v55 = vpop.xlane.xlu0 %54
    %v56 = vrcp.pop 32.0
    %v57 = vmul.f32 %v52, %v56
    %v58 = vmul.f32 %v55, %v56
    %v59 = vsub.f32 %v43, %v57
    %v60 = vsub.f32 %v44, %v58
    %v61 = vmul.f32 %v59, %v59
    %v62 = vmul.f32 %v60, %v60
    %v63 = vsel %vm49, %v61, 0.0
    %64 = vadd.xlane.f32.xlu0 %v63
    %v65 = vpop.xlane.xlu0 %64
    %v66 = vsel %vm49, %v62, 0.0
    %67 = vadd.xlane.f32.xlu0 %v66
    %v68 = vpop.xlane.xlu0 %67
    %v69 = vmul.f32 %v65, %v56
    %v70 = vmul.f32 %v68, %v56
    %v71 = vadd.f32 %v69, 1e-12
    %v72 = vadd.f32 %v70, 1e-12
    %v73 = vrsqrt.pop %v71
    %v74 = vrsqrt.pop %v72
    %v75 = vmul.f32 %v59, %v73
    %v76 = vmul.f32 %v60, %v74
    %v77 = vlaneseq
    %v78 = vshrl.u32 %v77, 7
    %v79 = vsub.s32 0, %v78
    %v80 = vrot.slane %v47, %v79
    %v81 = vmul.f32 %v75, %v80
    %v82 = vmul.f32 %v76, %v80
    %v83 = vlaneseq
    %v84 = vshrl.u32 %v83, 7
    %v85 = vsub.s32 0, %v84
    %v86 = vrot.slane %v48, %v85
    %v87 = vadd.f32 %v81, %v86
    %v88 = vadd.f32 %v82, %v86
    %v89 = vpack.c.bf16 %v87, %v87
    %v90 = vpack.c.bf16 %v88, %v88
    %v91 = vld [vmem:[%s2] sm:$0xf]
    %v92 = vld [vmem:[%s2 + $0x4] sm:$0xf]
    %v93 = vld [vmem:[%s2 + $0x8] sm:$0xf]
    %v94 = vld [vmem:[%s2 + $0xc] sm:$0xf]
    %v95 = vld [vmem:[%s8] sm:$0x1]
    %v97 = vlaneseq
    %v98 = vshrl.u32 %v97, 7
    %v99 = vsub.s32 0, %v98
    %v100 = vrot.slane %v95, %v99
    %v104 = vunpack.c.l.b16 %v89
    %v105 = vunpack.c.l.b16 %v90
    %v106 = vpack.c.b16 %v105, %v104
    %v111 = vunpack.c.l.b16 %v91
    %v112 = vunpack.c.l.b16 %v92
    %v113 = vunpack.c.l.b16 %v93
    %v114 = vunpack.c.l.b16 %v94
    %v115 = vpack.c.b16 %v112, %v111
    %v116 = vpack.c.b16 %v114, %v113
    %v120 = vsel %vm49, %v106, 0
    %122 = vmatprep.subr.bf16.mxu0 0
    %123 = vmatpush1.bf16.msra.mxu0 0
    %124 = vmatprep.subr.bf16.mxu0 0
    %125 = vmatpush1.bf16.msra.mxu0 0
    %126 = vmatprep.subr.bf16.mxu0 0
    %127 = vmatpush1.bf16.msra.mxu0 0
    %128 = vmatprep.subr.bf16.mxu0 0
    %129 = vmatpush1.bf16.msra.mxu0 0
    %130 = vmatprep.subr.bf16.mxu0 0
    %131 = vmatpush1.bf16.msra.mxu0 0
    %132 = vmatprep.subr.bf16.mxu0 0
    %133 = vmatpush1.bf16.msra.mxu0 0
    %134 = vmatprep.subr.bf16.mxu0 0
    %135 = vmatpush1.bf16.msra.mxu0 %v116
    %136 = vmatprep.subr.bf16.mxu0 0
    %137 = vmatpush1.bf16.msra.mxu0 %v115
    %138 = vmatprep.subr.bf16.mxu0 0
    %139 = vmatpush2.bf16.msra.mxu0 0
    %140 = vmatprep.subr.bf16.mxu0 0
    %141 = vmatpush2.bf16.msra.mxu0 0
    %142 = vmatprep.subr.bf16.mxu0 0
    %143 = vmatpush2.bf16.msra.mxu0 0
    %144 = vmatprep.subr.bf16.mxu0 0
    %145 = vmatpush2.bf16.msra.mxu0 0
    %146 = vmatprep.subr.bf16.mxu0 0
    %147 = vmatpush2.bf16.msra.mxu0 0
    %148 = vmatprep.subr.bf16.mxu0 0
    %149 = vmatpush2.bf16.msra.mxu0 0
    %150 = vmatprep.subr.bf16.mxu0 0
    %151 = vmatpush2.bf16.msra.mxu0 0
    %152 = vmatprep.subr.bf16.mxu0 0
    %153 = vmatpush2.bf16.msra.mxu0 0
    %154 = vmatprep.mubr.bf16.mxu0 0
    %155 = vmatmul.mubr.bf16.gmra.mxu0 %v120
    %v156 = vpop.f32.mrf.mxu0
    %v157 = vadd.f32 %v100, %v156
    %v158 = vpop.f32.mrf.mxu0
    %v159 = vpop.f32.mrf.mxu0
    %v160 = vadd.f32 %v100, %v159
    %v161 = vpop.f32.mrf.mxu0
    %162 = vdwg.mxu0
    %v163 = vpack.c.bf16 %v157, %v157
    %v164 = vpack.c.bf16 %v160, %v160
    %166 = vrot.lane.b32.xlu0 %v163, 96
    %v167 = vpop.permute.xlu0 %166
    %v169 = vsel %vm49, %v163, 0
    %v172 = vsel %vm49, %v167, 0
    %174 = vmatprep.subr.bf16.mxu0 0
    %175 = vmatpush1.bf16.xpose.msra.mxu0 0
    %176 = vmatprep.subr.bf16.mxu0 0
    %177 = vmatpush1.bf16.xpose.msra.mxu0 0
    %178 = vmatprep.subr.bf16.mxu0 0
    %179 = vmatpush1.bf16.xpose.msra.mxu0 0
    %180 = vmatprep.subr.bf16.mxu0 0
    %181 = vmatpush1.bf16.xpose.msra.mxu0 0
    %182 = vmatprep.subr.bf16.mxu0 0
    %183 = vmatpush1.bf16.xpose.msra.mxu0 0
    %184 = vmatprep.subr.bf16.mxu0 0
    %185 = vmatpush1.bf16.xpose.msra.mxu0 0
    %186 = vmatprep.subr.bf16.mxu0 0
    %187 = vmatpush1.bf16.xpose.msra.mxu0 0
    %188 = vmatprep.subr.bf16.mxu0 0
    %189 = vmatpush1.bf16.xpose.msra.mxu0 %v172
    %190 = vmatprep.subr.bf16.mxu0 0
    %191 = vmatpush2.bf16.xpose.msra.mxu0 0
    %192 = vmatprep.subr.bf16.mxu0 0
    %193 = vmatpush2.bf16.xpose.msra.mxu0 0
    %194 = vmatprep.subr.bf16.mxu0 0
    %195 = vmatpush2.bf16.xpose.msra.mxu0 0
    %196 = vmatprep.subr.bf16.mxu0 0
    %197 = vmatpush2.bf16.xpose.msra.mxu0 0
    %198 = vmatprep.subr.bf16.mxu0 0
    %199 = vmatpush2.bf16.xpose.msra.mxu0 0
    %200 = vmatprep.subr.bf16.mxu0 0
    %201 = vmatpush2.bf16.xpose.msra.mxu0 0
    %202 = vmatprep.subr.bf16.mxu0 0
    %203 = vmatpush2.bf16.xpose.msra.mxu0 0
    %204 = vmatprep.subr.bf16.mxu0 0
    %205 = vmatpush2.bf16.xpose.msra.mxu0 0
    %206 = vmatprep.mubr.bf16.mxu0 0
    %207 = vmatmul.mubr.bf16.gmra.mxu0 %v169
    %v208 = vpop.f32.mrf.mxu0
    %v209 = vadd.f32 0.0, %v208
    %v210 = vpop.f32.mrf.mxu0
    %v211 = vpop.f32.mrf.mxu0
    %v212 = vpop.f32.mrf.mxu0
    %213 = vdwg.mxu0
    %215 = vrot.lane.b32.xlu0 %v164, 96
    %v216 = vpop.permute.xlu0 %215
    %v218 = vsel %vm49, %v164, 0
    %v221 = vsel %vm49, %v216, 0
    %223 = vmatprep.subr.bf16.mxu0 0
    %224 = vmatpush1.bf16.xpose.msra.mxu0 0
    %225 = vmatprep.subr.bf16.mxu0 0
    %226 = vmatpush1.bf16.xpose.msra.mxu0 0
    %227 = vmatprep.subr.bf16.mxu0 0
    %228 = vmatpush1.bf16.xpose.msra.mxu0 0
    %229 = vmatprep.subr.bf16.mxu0 0
    %230 = vmatpush1.bf16.xpose.msra.mxu0 0
    %231 = vmatprep.subr.bf16.mxu0 0
    %232 = vmatpush1.bf16.xpose.msra.mxu0 0
    %233 = vmatprep.subr.bf16.mxu0 0
    %234 = vmatpush1.bf16.xpose.msra.mxu0 0
    %235 = vmatprep.subr.bf16.mxu0 0
    %236 = vmatpush1.bf16.xpose.msra.mxu0 0
    %237 = vmatprep.subr.bf16.mxu0 0
    %238 = vmatpush1.bf16.xpose.msra.mxu0 %v221
    %239 = vmatprep.subr.bf16.mxu0 0
    %240 = vmatpush2.bf16.xpose.msra.mxu0 0
    %241 = vmatprep.subr.bf16.mxu0 0
    %242 = vmatpush2.bf16.xpose.msra.mxu0 0
    %243 = vmatprep.subr.bf16.mxu0 0
    %244 = vmatpush2.bf16.xpose.msra.mxu0 0
    %245 = vmatprep.subr.bf16.mxu0 0
    %246 = vmatpush2.bf16.xpose.msra.mxu0 0
    %247 = vmatprep.subr.bf16.mxu0 0
    %248 = vmatpush2.bf16.xpose.msra.mxu0 0
    %249 = vmatprep.subr.bf16.mxu0 0
    %250 = vmatpush2.bf16.xpose.msra.mxu0 0
    %251 = vmatprep.subr.bf16.mxu0 0
    %252 = vmatpush2.bf16.xpose.msra.mxu0 0
    %253 = vmatprep.subr.bf16.mxu0 0
    %254 = vmatpush2.bf16.xpose.msra.mxu0 0
    %255 = vmatprep.mubr.bf16.mxu0 0
    %256 = vmatmul.mubr.bf16.gmra.mxu0 %v218
    %v257 = vpop.f32.mrf.mxu0
    %v258 = vadd.f32 0.0, %v257
    %v259 = vpop.f32.mrf.mxu0
    %v260 = vpop.f32.mrf.mxu0
    %v261 = vpop.f32.mrf.mxu0
    %262 = vdwg.mxu0
    %v263 = vmul.f32 %v209, 0.17677669
    %v264 = vmul.f32 %v258, 0.17677669
    %v265 = vsub.f32 1.0, %v46
    %v268 = vunpack.c.l.s4 1966171168
    %v269 = vunpack.c.0.s8 %v268
    %v270 = vlaneseq
    %v271 = vshrl.u32 %v270, 7
    %v272 = vsub.s32 %v269, %v271
    %v273 = vrot.slane %v265, %v272
    %v274 = vcombine.high %v273, %v273
    %v276 = vunpack.c.l.s4 1966171168
    %v277 = vunpack.c.0.s8 %v276
    %v278 = vlaneseq
    %v279 = vshrl.u32 %v278, 7
    %v280 = vsub.s32 %v277, %v279
    %v281 = vrot.slane %v273, %v280
    %v283 = vunpack.c.l.s4 1966171168
    %v284 = vunpack.c.0.s8 %v283
    %v285 = vlaneseq
    %v286 = vshrl.u32 %v285, 7
    %v287 = vsub.s32 %v284, %v286
    %v288 = vrot.slane %v274, %v287
    %v291 = vmul.f32 %v281, -1e+09
    %v292 = vmul.f32 %v288, -1e+09
    %v295 = vlaneseq
    %v296 = vshrl.u32 %v295, 7
    %v297 = vsub.s32 0, %v296
    %v298 = vrot.slane %v291, %v297
    %v299 = vlaneseq
    %v300 = vshrl.u32 %v299, 7
    %v301 = vsub.s32 0, %v300
    %v302 = vrot.slane %v292, %v301
    %v305 = vadd.f32 %v263, %v298
    %v306 = vadd.f32 %v264, %v302
    %vm307 = vcmask 64512
    %v308 = vsel %vm307, %v305, -inf
    %309 = vmax.xlane.f32.xlu0 %v308
    %v310 = vpop.xlane.xlu0 %309
    %v311 = vsel %vm307, %v306, -inf
    %312 = vmax.xlane.f32.xlu0 %v311
    %v313 = vpop.xlane.xlu0 %312
    %v314 = vsub.f32 %v305, %v310
    %v315 = vsub.f32 %v306, %v313
    %v316 = vmul.f32 %v314, 1.442695
    %v317 = vpow.pop %v316
    %v318 = vmul.f32 %v315, 1.442695
    %v319 = vpow.pop %v318
    %v320 = vsel %vm307, %v317, 0.0
    %321 = vadd.xlane.f32.xlu0 %v320
    %v322 = vpop.xlane.xlu0 %321
    %v323 = vsel %vm307, %v319, 0.0
    %324 = vadd.xlane.f32.xlu0 %v323
    %v325 = vpop.xlane.xlu0 %324
    %v326 = vrcp.pop %v322
    %v327 = vrcp.pop %v325
    %v328 = vmul.f32 %v317, %v326
    %v329 = vmul.f32 %v319, %v327
    %v330 = vpack.c.bf16 %v328, %v328
    %v331 = vpack.c.bf16 %v329, %v329
    %332 = vrot.lane.b32.xlu0 %v163, 64
    %v333 = vpop.permute.xlu0 %332
    %v335 = vsel %vm307, %v330, 0
    %vm337 = vcmask 1043456
    %v339 = vsel %vm337, %v333, 0
    %341 = vmatprep.subr.bf16.mxu0 0
    %342 = vmatpush1.bf16.msra.mxu0 0
    %343 = vmatprep.subr.bf16.mxu0 0
    %344 = vmatpush1.bf16.msra.mxu0 0
    %345 = vmatprep.subr.bf16.mxu0 0
    %346 = vmatpush1.bf16.msra.mxu0 0
    %347 = vmatprep.subr.bf16.mxu0 0
    %348 = vmatpush1.bf16.msra.mxu0 0
    %349 = vmatprep.subr.bf16.mxu0 0
    %350 = vmatpush1.bf16.msra.mxu0 0
    %351 = vmatprep.subr.bf16.mxu0 0
    %352 = vmatpush1.bf16.msra.mxu0 0
    %353 = vmatprep.subr.bf16.mxu0 0
    %354 = vmatpush1.bf16.msra.mxu0 0
    %355 = vmatprep.subr.bf16.mxu0 0
    %356 = vmatpush1.bf16.msra.mxu0 %v339
    %357 = vmatprep.subr.bf16.mxu0 0
    %358 = vmatpush2.bf16.msra.mxu0 0
    %359 = vmatprep.subr.bf16.mxu0 0
    %360 = vmatpush2.bf16.msra.mxu0 0
    %361 = vmatprep.subr.bf16.mxu0 0
    %362 = vmatpush2.bf16.msra.mxu0 0
    %363 = vmatprep.subr.bf16.mxu0 0
    %364 = vmatpush2.bf16.msra.mxu0 0
    %365 = vmatprep.subr.bf16.mxu0 0
    %366 = vmatpush2.bf16.msra.mxu0 0
    %367 = vmatprep.subr.bf16.mxu0 0
    %368 = vmatpush2.bf16.msra.mxu0 0
    %369 = vmatprep.subr.bf16.mxu0 0
    %370 = vmatpush2.bf16.msra.mxu0 0
    %371 = vmatprep.subr.bf16.mxu0 0
    %372 = vmatpush2.bf16.msra.mxu0 0
    %373 = vmatprep.mubr.bf16.mxu0 0
    %374 = vmatmul.mubr.bf16.gmra.mxu0 %v335
    %v375 = vpop.f32.mrf.mxu0
    %v376 = vadd.f32 0.0, %v375
    %v377 = vpop.f32.mrf.mxu0
    %v378 = vpop.f32.mrf.mxu0
    %v379 = vpop.f32.mrf.mxu0
    %380 = vdwg.mxu0
    %381 = vrot.lane.b32.xlu0 %v164, 64
    %v382 = vpop.permute.xlu0 %381
    %v384 = vsel %vm307, %v331, 0
    %v387 = vsel %vm337, %v382, 0
    %389 = vmatprep.subr.bf16.mxu0 0
    %390 = vmatpush1.bf16.msra.mxu0 0
    %391 = vmatprep.subr.bf16.mxu0 0
    %392 = vmatpush1.bf16.msra.mxu0 0
    %393 = vmatprep.subr.bf16.mxu0 0
    %394 = vmatpush1.bf16.msra.mxu0 0
    %395 = vmatprep.subr.bf16.mxu0 0
    %396 = vmatpush1.bf16.msra.mxu0 0
    %397 = vmatprep.subr.bf16.mxu0 0
    %398 = vmatpush1.bf16.msra.mxu0 0
    %399 = vmatprep.subr.bf16.mxu0 0
    %400 = vmatpush1.bf16.msra.mxu0 0
    %401 = vmatprep.subr.bf16.mxu0 0
    %402 = vmatpush1.bf16.msra.mxu0 0
    %403 = vmatprep.subr.bf16.mxu0 0
    %404 = vmatpush1.bf16.msra.mxu0 %v387
    %405 = vmatprep.subr.bf16.mxu0 0
    %406 = vmatpush2.bf16.msra.mxu0 0
    %407 = vmatprep.subr.bf16.mxu0 0
    %408 = vmatpush2.bf16.msra.mxu0 0
    %409 = vmatprep.subr.bf16.mxu0 0
    %410 = vmatpush2.bf16.msra.mxu0 0
    %411 = vmatprep.subr.bf16.mxu0 0
    %412 = vmatpush2.bf16.msra.mxu0 0
    %413 = vmatprep.subr.bf16.mxu0 0
    %414 = vmatpush2.bf16.msra.mxu0 0
    %415 = vmatprep.subr.bf16.mxu0 0
    %416 = vmatpush2.bf16.msra.mxu0 0
    %417 = vmatprep.subr.bf16.mxu0 0
    %418 = vmatpush2.bf16.msra.mxu0 0
    %419 = vmatprep.subr.bf16.mxu0 0
    %420 = vmatpush2.bf16.msra.mxu0 0
    %421 = vmatprep.mubr.bf16.mxu0 0
    %422 = vmatmul.mubr.bf16.gmra.mxu0 %v384
    %v423 = vpop.f32.mrf.mxu0
    %v424 = vadd.f32 0.0, %v423
    %v425 = vpop.f32.mrf.mxu0
    %v426 = vpop.f32.mrf.mxu0
    %v427 = vpop.f32.mrf.mxu0
    %428 = vdwg.mxu0
    %v429 = vpack.c.bf16 %v376, %v376
    %v430 = vpack.c.bf16 %v424, %v424
    %v431 = vld [vmem:[%s3] sm:$0xf]
    %v432 = vld [vmem:[%s3 + $0x4] sm:$0xf]
    %v433 = vld [vmem:[%s3 + $0x8] sm:$0xf]
    %v434 = vld [vmem:[%s3 + $0xc] sm:$0xf]
    %v435 = vld [vmem:[%s11 + $0x2] sm:$0x1]
    %v436 = vlaneseq
    %v437 = vshrl.u32 %v436, 7
    %v438 = vsub.s32 0, %v437
    %v439 = vrot.slane %v435, %v438
    %v442 = vunpack.c.l.b16 %v429
    %v443 = vunpack.c.l.b16 %v430
    %v444 = vpack.c.b16 %v443, %v442
    %v449 = vunpack.c.l.b16 %v431
    %v450 = vunpack.c.l.b16 %v432
    %v451 = vunpack.c.l.b16 %v433
    %v452 = vunpack.c.l.b16 %v434
    %v453 = vpack.c.b16 %v450, %v449
    %v454 = vpack.c.b16 %v452, %v451
    %v458 = vsel %vm49, %v444, 0
    %460 = vmatprep.subr.bf16.mxu0 0
    %461 = vmatpush1.bf16.msra.mxu0 0
    %462 = vmatprep.subr.bf16.mxu0 0
    %463 = vmatpush1.bf16.msra.mxu0 0
    %464 = vmatprep.subr.bf16.mxu0 0
    %465 = vmatpush1.bf16.msra.mxu0 0
    %466 = vmatprep.subr.bf16.mxu0 0
    %467 = vmatpush1.bf16.msra.mxu0 0
    %468 = vmatprep.subr.bf16.mxu0 0
    %469 = vmatpush1.bf16.msra.mxu0 0
    %470 = vmatprep.subr.bf16.mxu0 0
    %471 = vmatpush1.bf16.msra.mxu0 0
    %472 = vmatprep.subr.bf16.mxu0 0
    %473 = vmatpush1.bf16.msra.mxu0 %v454
    %474 = vmatprep.subr.bf16.mxu0 0
    %475 = vmatpush1.bf16.msra.mxu0 %v453
    %476 = vmatprep.subr.bf16.mxu0 0
    %477 = vmatpush2.bf16.msra.mxu0 0
    %478 = vmatprep.subr.bf16.mxu0 0
    %479 = vmatpush2.bf16.msra.mxu0 0
    %480 = vmatprep.subr.bf16.mxu0 0
    %481 = vmatpush2.bf16.msra.mxu0 0
    %482 = vmatprep.subr.bf16.mxu0 0
    %483 = vmatpush2.bf16.msra.mxu0 0
    %484 = vmatprep.subr.bf16.mxu0 0
    %485 = vmatpush2.bf16.msra.mxu0 0
    %486 = vmatprep.subr.bf16.mxu0 0
    %487 = vmatpush2.bf16.msra.mxu0 0
    %488 = vmatprep.subr.bf16.mxu0 0
    %489 = vmatpush2.bf16.msra.mxu0 0
    %490 = vmatprep.subr.bf16.mxu0 0
    %491 = vmatpush2.bf16.msra.mxu0 0
    %492 = vmatprep.mubr.bf16.mxu0 0
    %493 = vmatmul.mubr.bf16.gmra.mxu0 %v458
    %v494 = vpop.f32.mrf.mxu0
    %v495 = vadd.f32 %v439, %v494
    %v496 = vpop.f32.mrf.mxu0
    %v497 = vpop.f32.mrf.mxu0
    %v498 = vadd.f32 %v439, %v497
    %v499 = vpop.f32.mrf.mxu0
    %500 = vdwg.mxu0
    %v501 = vadd.f32 %v87, %v495
    %v502 = vadd.f32 %v88, %v498
    %v503 = vld [vmem:[%s11 + $0x3] sm:$0x1]
    %v504 = vld [vmem:[%s11 + $0x4] sm:$0x1]
    %v505 = vsel %vm49, %v501, 0.0
    %506 = vadd.xlane.f32.xlu0 %v505
    %v507 = vpop.xlane.xlu0 %506
    %v508 = vsel %vm49, %v502, 0.0
    %509 = vadd.xlane.f32.xlu0 %v508
    %v510 = vpop.xlane.xlu0 %509
    %v511 = vmul.f32 %v507, %v56
    %v512 = vmul.f32 %v510, %v56
    %v513 = vsub.f32 %v501, %v511
    %v514 = vsub.f32 %v502, %v512
    %v515 = vmul.f32 %v513, %v513
    %v516 = vmul.f32 %v514, %v514
    %v517 = vsel %vm49, %v515, 0.0
    %518 = vadd.xlane.f32.xlu0 %v517
    %v519 = vpop.xlane.xlu0 %518
    %v520 = vsel %vm49, %v516, 0.0
    %521 = vadd.xlane.f32.xlu0 %v520
    %v522 = vpop.xlane.xlu0 %521
    %v523 = vmul.f32 %v519, %v56
    %v524 = vmul.f32 %v522, %v56
    %v525 = vadd.f32 %v523, 1e-12
    %v526 = vadd.f32 %v524, 1e-12
    %v527 = vrsqrt.pop %v525
    %v528 = vrsqrt.pop %v526
    %v529 = vmul.f32 %v513, %v527
    %v530 = vmul.f32 %v514, %v528
    %v531 = vlaneseq
    %v532 = vshrl.u32 %v531, 7
    %v533 = vsub.s32 0, %v532
    %v534 = vrot.slane %v503, %v533
    %v535 = vmul.f32 %v529, %v534
    %v536 = vmul.f32 %v530, %v534
    %v537 = vlaneseq
    %v538 = vshrl.u32 %v537, 7
    %v539 = vsub.s32 0, %v538
    %v540 = vrot.slane %v504, %v539
    %v541 = vadd.f32 %v535, %v540
    %v542 = vadd.f32 %v536, %v540
    %v543 = vpack.c.bf16 %v541, %v541
    %v544 = vpack.c.bf16 %v542, %v542
    %v545 = vld [vmem:[%s4] sm:$0xf]
    %v546 = vld [vmem:[%s4 + $0x4] sm:$0xf]
    %v547 = vld [vmem:[%s4 + $0x8] sm:$0xf]
    %v548 = vld [vmem:[%s4 + $0xc] sm:$0xf]
    %v549 = vld [vmem:[%s9] sm:$0x1]
    %v551 = vlaneseq
    %v552 = vshrl.u32 %v551, 7
    %v553 = vsub.s32 0, %v552
    %v554 = vrot.slane %v549, %v553
    %v558 = vunpack.c.l.b16 %v543
    %v559 = vunpack.c.l.b16 %v544
    %v560 = vpack.c.b16 %v559, %v558
    %v565 = vunpack.c.l.b16 %v545
    %v566 = vunpack.c.l.b16 %v546
    %v567 = vunpack.c.l.b16 %v547
    %v568 = vunpack.c.l.b16 %v548
    %v569 = vpack.c.b16 %v566, %v565
    %v570 = vpack.c.b16 %v568, %v567
    %v574 = vsel %vm49, %v560, 0
    %576 = vmatprep.subr.bf16.mxu0 0
    %577 = vmatpush1.bf16.msra.mxu0 0
    %578 = vmatprep.subr.bf16.mxu0 0
    %579 = vmatpush1.bf16.msra.mxu0 0
    %580 = vmatprep.subr.bf16.mxu0 0
    %581 = vmatpush1.bf16.msra.mxu0 0
    %582 = vmatprep.subr.bf16.mxu0 0
    %583 = vmatpush1.bf16.msra.mxu0 0
    %584 = vmatprep.subr.bf16.mxu0 0
    %585 = vmatpush1.bf16.msra.mxu0 0
    %586 = vmatprep.subr.bf16.mxu0 0
    %587 = vmatpush1.bf16.msra.mxu0 0
    %588 = vmatprep.subr.bf16.mxu0 0
    %589 = vmatpush1.bf16.msra.mxu0 %v570
    %590 = vmatprep.subr.bf16.mxu0 0
    %591 = vmatpush1.bf16.msra.mxu0 %v569
    %592 = vmatprep.subr.bf16.mxu0 0
    %593 = vmatpush2.bf16.msra.mxu0 0
    %594 = vmatprep.subr.bf16.mxu0 0
    %595 = vmatpush2.bf16.msra.mxu0 0
    %596 = vmatprep.subr.bf16.mxu0 0
    %597 = vmatpush2.bf16.msra.mxu0 0
    %598 = vmatprep.subr.bf16.mxu0 0
    %599 = vmatpush2.bf16.msra.mxu0 0
    %600 = vmatprep.subr.bf16.mxu0 0
    %601 = vmatpush2.bf16.msra.mxu0 0
    %602 = vmatprep.subr.bf16.mxu0 0
    %603 = vmatpush2.bf16.msra.mxu0 0
    %604 = vmatprep.subr.bf16.mxu0 0
    %605 = vmatpush2.bf16.msra.mxu0 0
    %606 = vmatprep.subr.bf16.mxu0 0
    %607 = vmatpush2.bf16.msra.mxu0 0
    %608 = vmatprep.mubr.bf16.mxu0 0
    %609 = vmatmul.mubr.bf16.gmra.mxu0 %v574
    %v610 = vpop.f32.mrf.mxu0
    %v611 = vadd.f32 %v554, %v610
    %v612 = vpop.f32.mrf.mxu0
    %v613 = vpop.f32.mrf.mxu0
    %v614 = vadd.f32 %v554, %v613
    %v615 = vpop.f32.mrf.mxu0
    %616 = vdwg.mxu0
    %v617 = vmul.f32 %v611, 0.5
    %v618 = vmul.f32 %v614, 0.5
    %v619 = vmul.f32 %v611, 0.044715
    %v620 = vmul.f32 %v614, 0.044715
    %v621 = vmul.f32 %v619, %v611
    %v622 = vmul.f32 %v620, %v614
    %v623 = vmul.f32 %v621, %v611
    %v624 = vmul.f32 %v622, %v614
    %v625 = vadd.f32 %v611, %v623
    %v626 = vadd.f32 %v614, %v624
    %v627 = vmul.f32 %v625, 0.7978846
    %v628 = vmul.f32 %v626, 0.7978846
    %v629 = vtanh.pop %v627
    %v630 = vtanh.pop %v628
    %v631 = vadd.f32 %v629, 1.0
    %v632 = vadd.f32 %v630, 1.0
    %v633 = vmul.f32 %v617, %v631
    %v634 = vmul.f32 %v618, %v632
    %v635 = vpack.c.bf16 %v633, %v633
    %v636 = vpack.c.bf16 %v634, %v634
    %v637 = vld [vmem:[%s5] sm:$0xf]
    %v638 = vld [vmem:[%s5 + $0x4] sm:$0xf]
    %v639 = vld [vmem:[%s5 + $0x8] sm:$0xf]
    %v640 = vld [vmem:[%s5 + $0xc] sm:$0xf]
    %v641 = vld [vmem:[%s5 + $0x10] sm:$0xf]
    %v642 = vld [vmem:[%s5 + $0x14] sm:$0xf]
    %v643 = vld [vmem:[%s5 + $0x18] sm:$0xf]
    %v644 = vld [vmem:[%s5 + $0x1c] sm:$0xf]
    %v645 = vld [vmem:[%s11 + $0x5] sm:$0x1]
    %v646 = vlaneseq
    %v647 = vshrl.u32 %v646, 7
    %v648 = vsub.s32 0, %v647
    %v649 = vrot.slane %v645, %v648
    %v652 = vunpack.c.l.b16 %v635
    %v653 = vunpack.c.l.b16 %v636
    %v654 = vpack.c.b16 %v653, %v652
    %v663 = vunpack.c.l.b16 %v637
    %v664 = vunpack.c.l.b16 %v638
    %v665 = vunpack.c.l.b16 %v639
    %v666 = vunpack.c.l.b16 %v640
    %v667 = vunpack.c.l.b16 %v641
    %v668 = vunpack.c.l.b16 %v642
    %v669 = vunpack.c.l.b16 %v643
    %v670 = vunpack.c.l.b16 %v644
    %v671 = vpack.c.b16 %v664, %v663
    %v672 = vpack.c.b16 %v666, %v665
    %v673 = vpack.c.b16 %v668, %v667
    %v674 = vpack.c.b16 %v670, %v669
    %vm679 = vcmask 523264
    %v681 = vsel %vm679, %v654, 0
    %683 = vmatprep.subr.bf16.mxu0 0
    %684 = vmatpush1.bf16.msra.mxu0 0
    %685 = vmatprep.subr.bf16.mxu0 0
    %686 = vmatpush1.bf16.msra.mxu0 0
    %687 = vmatprep.subr.bf16.mxu0 0
    %688 = vmatpush1.bf16.msra.mxu0 0
    %689 = vmatprep.subr.bf16.mxu0 0
    %690 = vmatpush1.bf16.msra.mxu0 0
    %691 = vmatprep.subr.bf16.mxu0 0
    %692 = vmatpush1.bf16.msra.mxu0 %v674
    %693 = vmatprep.subr.bf16.mxu0 0
    %694 = vmatpush1.bf16.msra.mxu0 %v673
    %695 = vmatprep.subr.bf16.mxu0 0
    %696 = vmatpush1.bf16.msra.mxu0 %v672
    %697 = vmatprep.subr.bf16.mxu0 0
    %698 = vmatpush1.bf16.msra.mxu0 %v671
    %699 = vmatprep.subr.bf16.mxu0 0
    %700 = vmatpush2.bf16.msra.mxu0 0
    %701 = vmatprep.subr.bf16.mxu0 0
    %702 = vmatpush2.bf16.msra.mxu0 0
    %703 = vmatprep.subr.bf16.mxu0 0
    %704 = vmatpush2.bf16.msra.mxu0 0
    %705 = vmatprep.subr.bf16.mxu0 0
    %706 = vmatpush2.bf16.msra.mxu0 0
    %707 = vmatprep.subr.bf16.mxu0 0
    %708 = vmatpush2.bf16.msra.mxu0 0
    %709 = vmatprep.subr.bf16.mxu0 0
    %710 = vmatpush2.bf16.msra.mxu0 0
    %711 = vmatprep.subr.bf16.mxu0 0
    %712 = vmatpush2.bf16.msra.mxu0 0
    %713 = vmatprep.subr.bf16.mxu0 0
    %714 = vmatpush2.bf16.msra.mxu0 0
    %715 = vmatprep.mubr.bf16.mxu0 0
    %716 = vmatmul.mubr.bf16.gmra.mxu0 %v681
    %v717 = vpop.f32.mrf.mxu0
    %v718 = vadd.f32 %v649, %v717
    %v719 = vpop.f32.mrf.mxu0
    %v720 = vpop.f32.mrf.mxu0
    %v721 = vadd.f32 %v649, %v720
    %v722 = vpop.f32.mrf.mxu0
    %723 = vdwg.mxu0
    %v724 = vadd.f32 %v541, %v718
    %v725 = vadd.f32 %v542, %v721
    %v726 = vld [vmem:[%s11 + $0x6] sm:$0x1]
    %v727 = vld [vmem:[%s11 + $0x7] sm:$0x1]
    %v728 = vsel %vm49, %v724, 0.0
    %729 = vadd.xlane.f32.xlu0 %v728
    %v730 = vpop.xlane.xlu0 %729
    %v731 = vsel %vm49, %v725, 0.0
    %732 = vadd.xlane.f32.xlu0 %v731
    %v733 = vpop.xlane.xlu0 %732
    %v734 = vmul.f32 %v730, %v56
    %v735 = vmul.f32 %v733, %v56
    %v736 = vsub.f32 %v724, %v734
    %v737 = vsub.f32 %v725, %v735
    %v738 = vmul.f32 %v736, %v736
    %v739 = vmul.f32 %v737, %v737
    %v740 = vsel %vm49, %v738, 0.0
    %741 = vadd.xlane.f32.xlu0 %v740
    %v742 = vpop.xlane.xlu0 %741
    %v743 = vsel %vm49, %v739, 0.0
    %744 = vadd.xlane.f32.xlu0 %v743
    %v745 = vpop.xlane.xlu0 %744
    %v746 = vmul.f32 %v742, %v56
    %v747 = vmul.f32 %v745, %v56
    %v748 = vadd.f32 %v746, 1e-12
    %v749 = vadd.f32 %v747, 1e-12
    %v750 = vrsqrt.pop %v748
    %v751 = vrsqrt.pop %v749
    %v752 = vmul.f32 %v736, %v750
    %v753 = vmul.f32 %v737, %v751
    %v754 = vlaneseq
    %v755 = vshrl.u32 %v754, 7
    %v756 = vsub.s32 0, %v755
    %v757 = vrot.slane %v726, %v756
    %v758 = vmul.f32 %v752, %v757
    %v759 = vmul.f32 %v753, %v757
    %v760 = vlaneseq
    %v761 = vshrl.u32 %v760, 7
    %v762 = vsub.s32 0, %v761
    %v763 = vrot.slane %v727, %v762
    %v764 = vadd.f32 %v758, %v763
    %v765 = vadd.f32 %v759, %v763
    %v766 = vpack.c.bf16 %v764, %v764
    %v767 = vpack.c.bf16 %v765, %v765
    %v768 = vld [vmem:[%s6] sm:$0xf]
    %v769 = vld [vmem:[%s6 + $0x4] sm:$0xf]
    %v770 = vld [vmem:[%s6 + $0x8] sm:$0xf]
    %v771 = vld [vmem:[%s6 + $0xc] sm:$0xf]
    %v772 = vld [vmem:[%s11 + $0x8] sm:$0x1]
    %v773 = vlaneseq
    %v774 = vshrl.u32 %v773, 7
    %v775 = vsub.s32 0, %v774
    %v776 = vrot.slane %v772, %v775
    %v779 = vunpack.c.l.b16 %v766
    %v780 = vunpack.c.l.b16 %v767
    %v781 = vrot.slane %v780, 7
    %vm782 = vcmask 1041409
    %v783 = vsel %vm782, %v781, %v779
    %v784 = vpack.c.b16 %v783, %v783
    %v789 = vunpack.c.l.b16 %v768
    %v790 = vunpack.c.l.b16 %v769
    %v791 = vunpack.c.l.b16 %v770
    %v792 = vunpack.c.l.b16 %v771
    %v793 = vpack.c.b16 %v790, %v789
    %v794 = vpack.c.b16 %v792, %v791
    %v798 = vsel %vm49, %v784, 0
    %800 = vmatprep.subr.bf16.mxu0 0
    %801 = vmatpush1.bf16.msra.mxu0 0
    %802 = vmatprep.subr.bf16.mxu0 0
    %803 = vmatpush1.bf16.msra.mxu0 0
    %804 = vmatprep.subr.bf16.mxu0 0
    %805 = vmatpush1.bf16.msra.mxu0 0
    %806 = vmatprep.subr.bf16.mxu0 0
    %807 = vmatpush1.bf16.msra.mxu0 0
    %808 = vmatprep.subr.bf16.mxu0 0
    %809 = vmatpush1.bf16.msra.mxu0 0
    %810 = vmatprep.subr.bf16.mxu0 0
    %811 = vmatpush1.bf16.msra.mxu0 0
    %812 = vmatprep.subr.bf16.mxu0 0
    %813 = vmatpush1.bf16.msra.mxu0 %v794
    %814 = vmatprep.subr.bf16.mxu0 0
    %815 = vmatpush1.bf16.msra.mxu0 %v793
    %816 = vmatprep.subr.bf16.mxu0 0
    %817 = vmatpush2.bf16.msra.mxu0 0
    %818 = vmatprep.subr.bf16.mxu0 0
    %819 = vmatpush2.bf16.msra.mxu0 0
    %820 = vmatprep.subr.bf16.mxu0 0
    %821 = vmatpush2.bf16.msra.mxu0 0
    %822 = vmatprep.subr.bf16.mxu0 0
    %823 = vmatpush2.bf16.msra.mxu0 0
    %824 = vmatprep.subr.bf16.mxu0 0
    %825 = vmatpush2.bf16.msra.mxu0 0
    %826 = vmatprep.subr.bf16.mxu0 0
    %827 = vmatpush2.bf16.msra.mxu0 0
    %828 = vmatprep.subr.bf16.mxu0 0
    %829 = vmatpush2.bf16.msra.mxu0 0
    %830 = vmatprep.subr.bf16.mxu0 0
    %831 = vmatpush2.bf16.msra.mxu0 0
    %832 = vmatprep.mubr.bf16.mxu0 0
    %833 = vmatmul.mubr.bf16.gmra.mxu0 %v798
    %v834 = vpop.f32.mrf.mxu0
    %v835 = vadd.f32 %v776, %v834
    %v836 = vpop.f32.mrf.mxu0
    %v837 = vpop.f32.mrf.mxu0
    %v838 = vpop.f32.mrf.mxu0
    %839 = vdwg.mxu0
    %v840 = vtanh.pop %v835
    %v841 = vpack.c.bf16 %v840, %v840
    %v842 = vld [vmem:[%s7] sm:$0xf]
    %v843 = vld [vmem:[%s7 + $0x4] sm:$0xf]
    %v844 = vld [vmem:[%s7 + $0x8] sm:$0xf]
    %v845 = vld [vmem:[%s7 + $0xc] sm:$0xf]
    %v846 = vld [vmem:[%s10] sm:$0x1]
    %v848 = vlaneseq
    %v849 = vshrl.u32 %v848, 7
    %v850 = vsub.s32 0, %v849
    %v851 = vrot.slane %v846, %v850
    %v857 = vunpack.c.l.b16 %v842
    %v858 = vunpack.c.l.b16 %v843
    %v859 = vunpack.c.l.b16 %v844
    %v860 = vunpack.c.l.b16 %v845
    %v861 = vpack.c.b16 %v858, %v857
    %v862 = vpack.c.b16 %v860, %v859
    %v866 = vsel %vm49, %v841, 0
    %868 = vmatprep.subr.bf16.mxu0 0
    %869 = vmatpush1.bf16.msra.mxu0 0
    %870 = vmatprep.subr.bf16.mxu0 0
    %871 = vmatpush1.bf16.msra.mxu0 0
    %872 = vmatprep.subr.bf16.mxu0 0
    %873 = vmatpush1.bf16.msra.mxu0 0
    %874 = vmatprep.subr.bf16.mxu0 0
    %875 = vmatpush1.bf16.msra.mxu0 0
    %876 = vmatprep.subr.bf16.mxu0 0
    %877 = vmatpush1.bf16.msra.mxu0 0
    %878 = vmatprep.subr.bf16.mxu0 0
    %879 = vmatpush1.bf16.msra.mxu0 0
    %880 = vmatprep.subr.bf16.mxu0 0
    %881 = vmatpush1.bf16.msra.mxu0 %v862
    %882 = vmatprep.subr.bf16.mxu0 0
    %883 = vmatpush1.bf16.msra.mxu0 %v861
    %884 = vmatprep.subr.bf16.mxu0 0
    %885 = vmatpush2.bf16.msra.mxu0 0
    %886 = vmatprep.subr.bf16.mxu0 0
    %887 = vmatpush2.bf16.msra.mxu0 0
    %888 = vmatprep.subr.bf16.mxu0 0
    %889 = vmatpush2.bf16.msra.mxu0 0
    %890 = vmatprep.subr.bf16.mxu0 0
    %891 = vmatpush2.bf16.msra.mxu0 0
    %892 = vmatprep.subr.bf16.mxu0 0
    %893 = vmatpush2.bf16.msra.mxu0 0
    %894 = vmatprep.subr.bf16.mxu0 0
    %895 = vmatpush2.bf16.msra.mxu0 0
    %896 = vmatprep.subr.bf16.mxu0 0
    %897 = vmatpush2.bf16.msra.mxu0 0
    %898 = vmatprep.subr.bf16.mxu0 0
    %899 = vmatpush2.bf16.msra.mxu0 0
    %900 = vmatprep.mubr.bf16.mxu0 0
    %901 = vmatmul.mubr.bf16.gmra.mxu0 %v866
    %v902 = vpop.f32.mrf.mxu0
    %v903 = vadd.f32 %v851, %v902
    %v904 = vpop.f32.mrf.mxu0
    %v905 = vpop.f32.mrf.mxu0
    %v906 = vpop.f32.mrf.mxu0
    %907 = vdwg.mxu0
    %vm908 = vcmask 17408
    %v909 = vsel %vm908, %v903, -inf
    %910 = vmax.xlane.f32.xlu0 %v909
    %v911 = vpop.xlane.xlu0 %910
    %v912 = vsub.f32 %v903, %v911
    %v913 = vmul.f32 %v912, 1.442695
    %v914 = vpow.pop %v913
    %v915 = vsel %vm908, %v914, 0.0
    %916 = vadd.xlane.f32.xlu0 %v915
    %v917 = vpop.xlane.xlu0 %916
    %v918 = vrcp.pop %v917
    %v919 = vmul.f32 %v914, %v918
    %920 = vst.msk [vmem:[#allocation2] sm:$0x3] %vm908, %v919
    // Predicated region
    $region50: #{rationale_predictor_forward.1} parent=1 // pred_check
      _
    $region51: #{rationale_predictor_forward.1} parent=1 // pred_check_branch
      %922 = sbr.rel (0) target = $region53
    $region52: #{rationale_predictor_forward.1} parent=1 // pred_region
      %s924 = ssub.s32 32, 32
      %925 = vsyncadd [#allocation3], %s924
      %s927 = sshll.u32 [#allocation2], 4
      %s928 = int_to_ptr.vmem [resolvable:$true] %s927
      %930 = dma.vmem_to_hbm [thread:$0]  %s928, 32, %s12, [#allocation3]
    $region53: #{rationale_predictor_forward.1} parent=1 // pred_fallthru
      _
    // Predicated region
    $region54: #{rationale_predictor_forward.1} parent=1 // pred_check
      _
    $region55: #{rationale_predictor_forward.1} parent=1 // pred_check_branch
      %932 = sbr.rel (0) target = $region57
    $region56: #{rationale_predictor_forward.1} parent=1 // pred_region
      %933 = dma.done [#allocation3], 32
    $region57: #{rationale_predictor_forward.1} parent=1 // pred_fallthru
      _
    %934 = vsyncpa [#allocation3], 1

</llo_original>
